<compile_context>
chip_gen: v6e
topology: v6e:2x2x1
jax: 0.10.0
libtpu: 0.0.40
codegen_flags: <defaults>
</compile_context>

<pallas_src>
import math

import jax
import jax.numpy as jnp
from jax.experimental import pallas as pl
from jax.experimental.pallas import tpu as pltpu


def _round_up(x: int, m: int) -> int:
    return ((x + m - 1) // m) * m


def _rotation_kernel(sin_tab_ref, cos_tab_ref, sin_base_ref, cos_base_ref, o_ref):
    # sin/cos of the tile-base angle for this grid step: (1, C) rows, sublane-
    # broadcast against the resident (tile_rows, C) within-tile tables.
    s = sin_base_ref[0]          # (1, C)
    c = cos_base_ref[0]          # (1, C)
    # sin(base + within) = sin(base)*cos(within) + cos(base)*sin(within)
    # (the odd-column pi/2 phase is already folded into the tables).
    o_ref[...] = s * cos_tab_ref[...] + c * sin_tab_ref[...]


def sinusoidal_position_embedding(length: int, dim: int) -> jax.Array:
    """Equivalent of SinusoidalPositionEmbedding(dim).forward(length)."""
    assert dim % 2 == 0, "dim must be even (PyTorch module assumes this too)"

    # Packed lane-dense layout: C is a multiple of 128 and of dim, so a
    # row-major reshape (rows, C) <-> (rows * P, dim) is exact.
    C = math.lcm(dim, 128)
    P = C // dim  # positions packed per lane-dense row

    # ---- Tile / grid sizing -------------------------------------------------
    bytes_per_row = C * 4
    # Budget: double-buffered output + (conservatively) double-buffered
    # resident sin/cos tables = 6 block-sized VMEM buffers.
    vmem_budget = 24 << 20
    cap = max(8, (vmem_budget // (6 * bytes_per_row)) // 8 * 8)

    rows_needed = pl.cdiv(length, P)
    rows_padded = _round_up(rows_needed, 8)        # <= 7 extra packed rows
    grid_rows = max(pl.cdiv(rows_padded, cap), 1)
    if grid_rows == 1 and rows_padded >= 16:
        grid_rows = 2                              # let v7x use both TensorCores
    tile_rows = _round_up(pl.cdiv(rows_padded, grid_rows), 8)
    grid_rows = pl.cdiv(rows_padded, tile_rows)

    # ---- Precomputed tables (plain XLA ops, tiny vs. the output) ------------
    # NOTE: positions are exact in f32 only up to 2^24 (~16.7M), same caveat as
    # the PyTorch reference.
    col = jnp.arange(C, dtype=jnp.int32) % dim
    posoff = (jnp.arange(C, dtype=jnp.int32) // dim).astype(jnp.float32)
    freq = jnp.exp(
        (col // 2).astype(jnp.float32)
        * jnp.float32(-2.0 * math.log(10000.0) / dim)
    )                                              # (C,) == div_term per column
    is_even = (col % 2) == 0

    # Within-tile angles w = (row*P + posoff) * freq, with the odd-column pi/2
    # phase folded in exactly.
    within_pos = (
        jnp.arange(tile_rows, dtype=jnp.float32)[:, None] * float(P)
        + posoff[None, :]
    )
    w = within_pos * freq[None, :]
    sw, cw = jnp.sin(w), jnp.cos(w)
    sin_tab = jnp.where(is_even[None, :], sw, cw)   # sin(w + phase)
    cos_tab = jnp.where(is_even[None, :], cw, -sw)  # cos(w + phase)

    # Per-grid-step tile-base angles B = (i * tile_rows * P) * freq.
    base = (
        jnp.arange(grid_rows, dtype=jnp.float32) * float(tile_rows * P)
    )[:, None, None]
    B = base * freq[None, None, :]
    sin_base = jnp.sin(B)                           # (grid_rows, 1, C)
    cos_base = jnp.cos(B)

    # ---- Pallas call ---------------------------------------------------------
    cost = pl.CostEstimate(
        flops=3 * rows_padded * C,
        transcendentals=0,
        bytes_accessed=4 * (rows_padded * C + 2 * tile_rows * C + 2 * grid_rows * C),
    )

    packed = pl.pallas_call(
        _rotation_kernel,
        out_shape=jax.ShapeDtypeStruct((rows_padded, C), jnp.float32),
        grid_spec=pltpu.PrefetchScalarGridSpec(
            num_scalar_prefetch=0,
            grid=(grid_rows,),
            in_specs=[
                # Resident across grid steps (constant block index -> no re-DMA).
                pl.BlockSpec((tile_rows, C), lambda i: (0, 0)),   # sin table
                pl.BlockSpec((tile_rows, C), lambda i: (0, 0)),   # cos table
                # One (1, C) row per grid step (block == array in last two dims).
                pl.BlockSpec((1, 1, C), lambda i: (i, 0, 0)),     # sin(base)
                pl.BlockSpec((1, 1, C), lambda i: (i, 0, 0)),     # cos(base)
            ],
            out_specs=pl.BlockSpec((tile_rows, C), lambda i: (i, 0)),
        ),
        compiler_params=pltpu.CompilerParams(
            dimension_semantics=("parallel",),
            vmem_limit_bytes=32 * 1024 * 1024,
        ),
        cost_estimate=cost,
    )(sin_tab, cos_tab, sin_base, cos_base)

    # Row-major (rows_padded, C) is byte-identical to (rows_padded * P, dim).
    padded_length = rows_padded * P
    emb = packed.reshape(padded_length, dim)
    if padded_length != length:
        emb = emb[:length]
    return emb


def _reference(length: int, dim: int) -> jnp.ndarray:
    """Pure-JAX reference mirroring the PyTorch forward exactly."""
    position = jnp.arange(length, dtype=jnp.float32)[:, None]
    div_term = jnp.exp(
        jnp.arange(0, dim, 2, dtype=jnp.float32) * (-math.log(10000.0) / dim)
    )
    emb = jnp.zeros((length, dim), dtype=jnp.float32)
    emb = emb.at[:, 0::2].set(jnp.sin(position * div_term))
    emb = emb.at[:, 1::2].set(jnp.cos(position * div_term))
    return emb


if __name__ == "__main__":
    # The module has no learned parameters; forward takes only `length`.
    _ = jax.random.PRNGKey(0)

    # Small primary test (single tile, base angle = 0 -> matches ref exactly).
    length, dim = 8, 32
    out = jax.block_until_ready(sinusoidal_position_embedding(length, dim))
    ref = _reference(length, dim)
    assert out.shape == (length, dim)
    assert out.dtype == jnp.float32
    assert jnp.allclose(out, ref, atol=1e-5, rtol=1e-5)

    # Multi-tile test (2 grid steps, partial last block, P=2 packing, slice).
    # Loose tolerance: sin/cos of O(100)-rad f32 angles is ill-conditioned for
    # both the kernel's angle-addition form and the direct reference.
    length2, dim2 = 500, 64
    out2 = jax.block_until_ready(sinusoidal_position_embedding(length2, dim2))
    ref2 = _reference(length2, dim2)
    assert out2.shape == (length2, dim2)
    assert jnp.allclose(out2, ref2, atol=5e-4, rtol=5e-4)

    print("KERNEL_OK")
</pallas_src>

<mosaic_0001>
module attributes {stable_mosaic.version = 11 : i64} {
  func.func @_rotation_kernel(%arg0: i32, %arg1: memref<8x128xf32, #tpu.memory_space<vmem>>, %arg2: memref<8x128xf32, #tpu.memory_space<vmem>>, %arg3: memref<1x1x128xf32, #tpu.memory_space<vmem>>, %arg4: memref<1x1x128xf32, #tpu.memory_space<vmem>>, %arg5: memref<8x128xf32, #tpu.memory_space<vmem>>) attributes {dimension_semantics = [#tpu.dimension_semantics<parallel>], iteration_bounds = array<i64: 1>, scalar_prefetch = 0 : i64, scratch_operands = 0 : i64, tpu.core_type = #tpu.core_type<tc>, window_params = [{pipeline_mode = #tpu.pipeline_mode<synchronous>, transform_indices = @transform_0, window_bounds = array<i64: 8, 128>}, {pipeline_mode = #tpu.pipeline_mode<synchronous>, transform_indices = @transform_1, window_bounds = array<i64: 8, 128>}, {transform_indices = @transform_2, window_bounds = array<i64: 1, 1, 128>}, {transform_indices = @transform_3, window_bounds = array<i64: 1, 1, 128>}, {transform_indices = @transform_4, window_bounds = array<i64: 8, 128>}]} {
    %c0 = arith.constant 0 : index
    %c0_0 = arith.constant 0 : index
    %c0_1 = arith.constant 0 : index
    %0 = vector.load %arg3[%c0, %c0_0, %c0_1] : memref<1x1x128xf32, #tpu.memory_space<vmem>>, vector<1x1x128xf32>
    %1 = vector.shape_cast %0 : vector<1x1x128xf32> to vector<1x128xf32>
    %c0_2 = arith.constant 0 : index
    %c0_3 = arith.constant 0 : index
    %c0_4 = arith.constant 0 : index
    %2 = vector.load %arg4[%c0_2, %c0_3, %c0_4] : memref<1x1x128xf32, #tpu.memory_space<vmem>>, vector<1x1x128xf32>
    %3 = vector.shape_cast %2 : vector<1x1x128xf32> to vector<1x128xf32>
    %c0_5 = arith.constant 0 : index
    %c0_6 = arith.constant 0 : index
    %4 = vector.load %arg2[%c0_5, %c0_6] : memref<8x128xf32, #tpu.memory_space<vmem>>, vector<8x128xf32>
    %5 = vector.broadcast %1 : vector<1x128xf32> to vector<8x128xf32>
    %6 = arith.mulf %5, %4 : vector<8x128xf32>
    %c0_7 = arith.constant 0 : index
    %c0_8 = arith.constant 0 : index
    %7 = vector.load %arg1[%c0_7, %c0_8] : memref<8x128xf32, #tpu.memory_space<vmem>>, vector<8x128xf32>
    %8 = vector.broadcast %3 : vector<1x128xf32> to vector<8x128xf32>
    %9 = arith.mulf %8, %7 : vector<8x128xf32>
    %10 = arith.addf %6, %9 : vector<8x128xf32>
    %c0_9 = arith.constant 0 : index
    %c0_10 = arith.constant 0 : index
    %11 = vector.load %arg5[%c0_9, %c0_10] : memref<8x128xf32, #tpu.memory_space<vmem>>, vector<8x128xf32>
    tpu.vector_store %arg5[%c0_9, %c0_10], %10 {strides = array<i32>} : memref<8x128xf32, #tpu.memory_space<vmem>>, vector<8x128xf32>,
    return
  }
  func.func @transform_0(%arg0: i32) -> (i32, i32) {
    %c0_i32 = arith.constant 0 : i32
    %c0_i32_0 = arith.constant 0 : i32
    %c0_i32_1 = arith.constant 0 : i32
    return %c0_i32, %c0_i32_0 : i32, i32
  }
  func.func @transform_1(%arg0: i32) -> (i32, i32) {
    %c0_i32 = arith.constant 0 : i32
    %c0_i32_0 = arith.constant 0 : i32
    %c0_i32_1 = arith.constant 0 : i32
    return %c0_i32, %c0_i32_0 : i32, i32
  }
  func.func @transform_2(%arg0: i32) -> (i32, i32, i32) {
    %c0_i32 = arith.constant 0 : i32
    %c0_i32_0 = arith.constant 0 : i32
    %c0_i32_1 = arith.constant 0 : i32
    return %arg0, %c0_i32, %c0_i32_0 : i32, i32, i32
  }
  func.func @transform_3(%arg0: i32) -> (i32, i32, i32) {
    %c0_i32 = arith.constant 0 : i32
    %c0_i32_0 = arith.constant 0 : i32
    %c0_i32_1 = arith.constant 0 : i32
    return %arg0, %c0_i32, %c0_i32_0 : i32, i32, i32
  }
  func.func @transform_4(%arg0: i32) -> (i32, i32) {
    %c0_i32 = arith.constant 0 : i32
    %c0_i32_0 = arith.constant 0 : i32
    return %arg0, %c0_i32 : i32, i32
  }
}

</mosaic_0001>

<llo_original>
// kernel: tpu_custom_call.1
$region0: #{tpu_custom_call.1}
  #allocation0 [shape = 'u32[]', space=smem, size = 0x4, offset = 0x4, fixed_abs, tag = 'smem constant byte address 0x4 - core index']
  #allocation1 [shape = 'u32[144,128]{1,0:T(1,128)}', space=vmem, size = 0x12000, scoped, tag = 'internal scratch']
  %s0 = inlined_call_operand.hbm [shape: f32[8,128], index: 0, kind: input, shape index: {}]
  %s1 = inlined_call_operand.hbm [shape: f32[8,128], index: 1, kind: input, shape index: {}]
  %s2 = inlined_call_operand.vmem [shape: f32[1,1,128], index: 2, kind: input, shape index: {}]
  %s3 = inlined_call_operand.vmem [shape: f32[1,1,128], index: 3, kind: input, shape index: {}]
  %s4 = inlined_call_operand.hbm [shape: f32[8,128], index: 4, kind: output, shape index: {}]
  %s5 = sld [smem:[#allocation0]]
  $region34: #{tpu_custom_call.1} parent=0
    _
  %s7 = ssub.s32 1, %s5
  %s8 = scalar_select 0, %s7, %s5
  $region1: #{tpu_custom_call.1} parent=0
    #allocation2 [shape = 'u8[4096]{0}', space=vmem, size = 0x1000, scoped, tag = 'input window, operand 0, single buffered']
    #allocation3 [shape = 's32[1]{0}', space=sflag, size = 0x4, scoped, tag = 'scoped memory for tpu_custom_call.1']
    #allocation4 [shape = 's32[1]{0}', space=sflag, size = 0x4, scoped, tag = 'scoped memory for tpu_custom_call.1']
    #allocation5 [shape = 'u8[4096]{0}', space=vmem, size = 0x1000, scoped, tag = 'input window, operand 1, single buffered']
    #allocation6 [shape = 's32[1]{0}', space=sflag, size = 0x4, scoped, tag = 'scoped memory for tpu_custom_call.1']
    #allocation7 [shape = 'u8[4096]{0}', space=vmem, size = 0x1000, scoped, tag = 'output window, operand 0, single buffered']
    %9 = vsyncpa [#allocation3], 0
    %10 = vsyncpa [#allocation6], 0
    %11 = vsyncpa [#allocation4], 0
    // Predicated region
    $region2: #{tpu_custom_call.1} parent=1 // pred_check
      _
    $region3: #{tpu_custom_call.1} parent=1 // pred_check_branch
      %13 = sbr.rel (0) target = $region5
    $region4: #{tpu_custom_call.1} parent=1 // pred_region
      %s15 = ssub.s32 128, 128
      %16 = vsyncadd [#allocation3], %s15
      %s18 = sshll.u32 [#allocation2], 4
      %s19 = int_to_ptr.vmem [resolvable:$true] %s18
      %21 = dma.hbm_to_vmem [thread:$0]  %s0, 128, %s19, [#allocation3]
    $region5: #{tpu_custom_call.1} parent=1 // pred_fallthru
      _
    // Predicated region
    $region6: #{tpu_custom_call.1} parent=1 // pred_check
      _
    $region7: #{tpu_custom_call.1} parent=1 // pred_check_branch
      %23 = sbr.rel (0) target = $region9
    $region8: #{tpu_custom_call.1} parent=1 // pred_region
      %s25 = ssub.s32 128, 128
      %26 = vsyncadd [#allocation6], %s25
      %s28 = sshll.u32 [#allocation5], 4
      %s29 = int_to_ptr.vmem [resolvable:$true] %s28
      %31 = dma.hbm_to_vmem [thread:$0]  %s1, 128, %s29, [#allocation6]
    $region9: #{tpu_custom_call.1} parent=1 // pred_fallthru
      _
    // Predicated region
    $region10: #{tpu_custom_call.1} parent=1 // pred_check
      _
    $region11: #{tpu_custom_call.1} parent=1 // pred_check_branch
      %33 = sbr.rel (0) target = $region13
    $region12: #{tpu_custom_call.1} parent=1 // pred_region
      _
    $region13: #{tpu_custom_call.1} parent=1 // pred_fallthru
      _
    // Predicated region
    $region14: #{tpu_custom_call.1} parent=1 // pred_check
      _
    $region15: #{tpu_custom_call.1} parent=1 // pred_check_branch
      %35 = sbr.rel (0) target = $region17
    $region16: #{tpu_custom_call.1} parent=1 // pred_region
      _
    $region17: #{tpu_custom_call.1} parent=1 // pred_fallthru
      _
    // Predicated region
    $region18: #{tpu_custom_call.1} parent=1 // pred_check
      _
    $region19: #{tpu_custom_call.1} parent=1 // pred_check_branch
      %37 = sbr.rel (0) target = $region21
    $region20: #{tpu_custom_call.1} parent=1 // pred_region
      %38 = dma.done [#allocation3], 128
    $region21: #{tpu_custom_call.1} parent=1 // pred_fallthru
      _
    // Predicated region
    $region22: #{tpu_custom_call.1} parent=1 // pred_check
      _
    $region23: #{tpu_custom_call.1} parent=1 // pred_check_branch
      %40 = sbr.rel (0) target = $region25
    $region24: #{tpu_custom_call.1} parent=1 // pred_region
      %41 = dma.done [#allocation6], 128
    $region25: #{tpu_custom_call.1} parent=1 // pred_fallthru
      _
    %v42 = vld [vmem:[%s2] sm:$0x1]
    %v43 = vld [vmem:[%s3] sm:$0x1]
    %v44 = vld [vmem:[#allocation5] sm:$0xff]
    %v46 = vlaneseq
    %v47 = vshrl.u32 %v46, 7
    %v48 = vsub.s32 0, %v47
    %v49 = vrot.slane %v42, %v48
    %v51 = vmul.f32 %v49, %v44
    %v52 = vld [vmem:[#allocation2] sm:$0xff]
    %v54 = vlaneseq
    %v55 = vshrl.u32 %v54, 7
    %v56 = vsub.s32 0, %v55
    %v57 = vrot.slane %v43, %v56
    %v59 = vmul.f32 %v57, %v52
    %v60 = vadd.f32 %v51, %v59
    %61 = vst [vmem:[#allocation7] sm:$0xff] %v60
    // Predicated region
    $region26: #{tpu_custom_call.1} parent=1 // pred_check
      _
    $region27: #{tpu_custom_call.1} parent=1 // pred_check_branch
      %63 = sbr.rel (0) target = $region29
    $region28: #{tpu_custom_call.1} parent=1 // pred_region
      %s65 = ssub.s32 128, 128
      %66 = vsyncadd [#allocation4], %s65
      %s68 = sshll.u32 [#allocation7], 4
      %s69 = int_to_ptr.vmem [resolvable:$true] %s68
      %71 = dma.vmem_to_hbm [thread:$0]  %s69, 128, %s4, [#allocation4]
    $region29: #{tpu_custom_call.1} parent=1 // pred_fallthru
      _
    // Predicated region
    $region30: #{tpu_custom_call.1} parent=1 // pred_check
      _
    $region31: #{tpu_custom_call.1} parent=1 // pred_check_branch
      %73 = sbr.rel (0) target = $region33
    $region32: #{tpu_custom_call.1} parent=1 // pred_region
      %74 = dma.done [#allocation4], 128
    $region33: #{tpu_custom_call.1} parent=1 // pred_fallthru
      _
    %75 = vsyncpa [#allocation3], 1
    %76 = vsyncpa [#allocation6], 1
    %77 = vsyncpa [#allocation4], 1

</llo_original>
